<compile_context>
chip_gen: v7x
topology: tpu7x:2x2x1
jax: 0.10.0
libtpu: 0.0.40
codegen_flags: <defaults>
</compile_context>

<pallas_src>
import jax
import jax.numpy as jnp
from jax.experimental import pallas as pl
from jax.experimental.pallas import tpu as pltpu


def _round_up(v, m):
    return ((v + m - 1) // m) * m


def _choose_batch_tiling(batch, max_tb=2048):
    """Pick (TB, num_tiles): TB multiple of 128 dividing round_up(B, 128)
    (so padding waste < 128 rows), TB <= max_tb, and >= 2 tiles whenever the
    padded batch spans more than one 128-row group (v7x has 2 TensorCores)."""
    b128 = _round_up(max(batch, 1), 128)
    nblk = b128 // 128                      # number of 128-row groups
    max_blk = max(1, max_tb // 128)
    best = 1                                # t = 128-groups per tile
    for t in range(1, min(nblk, max_blk) + 1):
        if nblk % t == 0 and nblk // t >= 2:
            best = t
    if nblk == 1:
        best = 1                            # single 128-row tile
    tb = 128 * best
    return tb, b128 // tb


def _actor_kernel(clip_ref, x_ref, *rest):
    """Feature-major fused MLP.

    clip_ref: (2,) f32 in SMEM = [a_low, a_high]
    x_ref:    (S, TB) f32       x^T tile, batch on lanes
    rest:     w1, b1, ..., wN, bN, mu_ref
              w_l: (out_l, in_l) resident VMEM (matmul dtype)
              b_l: (out_l, 1)    resident VMEM f32
    mu_ref:   (1, TB) f32       lane-dense output tile
    """
    mu_ref = rest[-1]
    params = rest[:-1]
    n_layers = len(params) // 2

    a_low = clip_ref[0]
    a_high = clip_ref[1]

    h = x_ref[...]                                    # [S, TB] f32
    for l in range(n_layers):
        w = params[2 * l][...]                        # [out, in]
        b = params[2 * l + 1][...]                    # [out, 1] f32
        z = jnp.dot(w, h.astype(w.dtype),
                    preferred_element_type=jnp.float32) + b
        h = jnp.tanh(z) if l + 1 < n_layers else z    # last layer: no tanh

    # h is [1, TB]; padded batch lanes beyond B are clip(b_last,...) but the
    # wrapper slices [:B], preserving correctness for one-sided clip ranges.
    mu_ref[...] = jnp.clip(h, a_low, a_high).astype(mu_ref.dtype)


def prepare_actor_params(params, *, matmul_dtype=jnp.float32):
    """One-time packing (call when params change, NOT every forward):
    W [in, out] -> W^T [out, in] cast to matmul_dtype; b [1, out] -> [out, 1] f32."""
    packed = []
    for (w, b) in params:
        packed.append(jnp.asarray(w, jnp.float32).T.astype(matmul_dtype))
        packed.append(jnp.asarray(b, jnp.float32).reshape(-1, 1))
    return tuple(packed)


def actor_forward(x, prepared_params, a_low, a_high, *, max_tb=2048):
    """x: [B, state_size]. prepared_params: output of prepare_actor_params.

    Returns (mu [B,1], std [B,1]) matching the PyTorch Actor.forward.
    """
    B, S = x.shape

    TB, num_tiles = _choose_batch_tiling(B, max_tb)
    b_pad = TB * num_tiles

    # Feature-major input: x^T [S, b_pad]; only the (tiny) batch axis is padded.
    xt = jnp.asarray(x, jnp.float32).T
    if b_pad != B:
        xt = jnp.pad(xt, ((0, 0), (0, b_pad - B)))

    # Runtime clip bounds live in SMEM -> no recompile when they change.
    clip = jnp.asarray([a_low, a_high], jnp.float32)

    # Resident parameter blocks: full-array block shapes, constant index_map.
    param_specs = [pl.BlockSpec(p.shape, lambda i: (0, 0))
                   for p in prepared_params]

    mu_t = pl.pallas_call(
        _actor_kernel,
        out_shape=jax.ShapeDtypeStruct((1, b_pad), jnp.float32),
        grid=(num_tiles,),
        in_specs=[
            pl.BlockSpec(memory_space=pltpu.MemorySpace.SMEM),   # clip bounds
            pl.BlockSpec((S, TB), lambda i: (0, i)),             # x^T tiles
            *param_specs,                                        # resident W/b
        ],
        out_specs=pl.BlockSpec((1, TB), lambda i: (0, i)),       # lane-dense mu^T
        compiler_params=pltpu.CompilerParams(
            dimension_semantics=("parallel",)),
    )(clip, xt, *prepared_params)

    mu = mu_t[0, :B].reshape(B, 1)
    # std = exp(zeros_like(mu)) == 1; constant, produced outside the kernel.
    std = jnp.ones_like(mu)
    return mu, std


def init_actor_params(key, state_size, hidden):
    """Deterministic PyTorch-style init: U(-1/sqrt(fan_in), 1/sqrt(fan_in)).
    Returns [(W [in,out], b [1,out]) x 4]."""
    dims = [state_size, hidden[0], hidden[1], hidden[2], 1]
    params = []
    for i in range(4):
        fan_in, fan_out = dims[i], dims[i + 1]
        key, kw, kb = jax.random.split(key, 3)
        bound = 1.0 / (fan_in ** 0.5)
        w = jax.random.uniform(kw, (fan_in, fan_out), jnp.float32,
                               minval=-bound, maxval=bound)
        b = jax.random.uniform(kb, (1, fan_out), jnp.float32,
                               minval=-bound, maxval=bound)
        params.append((w, b))
    return params


def actor_forward_ref(x, params, a_low, a_high):
    h = x
    for i, (w, b) in enumerate(params):
        h = h @ w + b
        if i < len(params) - 1:
            h = jnp.tanh(h)
    mu = jnp.clip(h, a_low, a_high)
    return mu, jnp.ones_like(mu)


if __name__ == "__main__":
    state_space = 8
    hidden = (32, 32, 16)
    action_low, action_high = -1.0, 1.0
    batch = 8

    key = jax.random.PRNGKey(0)
    key, kx = jax.random.split(key)
    x = jax.random.normal(kx, (batch, state_space), jnp.float32)
    params = init_actor_params(key, state_space, hidden)

    # One-time parameter packing (hoisted out of the per-call path).
    # On v6e/v7x pass matmul_dtype=jnp.bfloat16 here for the fast MXU path
    # (loosens parity to ~1e-2); default f32 matches PyTorch to 1e-5.
    prepared = prepare_actor_params(params, matmul_dtype=jnp.float32)

    mu, std = actor_forward(x, prepared, action_low, action_high)
    mu = jax.block_until_ready(mu)
    std = jax.block_until_ready(std)

    mu_ref, std_ref = actor_forward_ref(x, params, action_low, action_high)
    assert mu.shape == (batch, 1) and std.shape == (batch, 1)
    assert jnp.allclose(mu, mu_ref, atol=1e-5, rtol=1e-5), (
        f"max |diff| = {jnp.max(jnp.abs(mu - mu_ref))}")
    assert jnp.allclose(std, std_ref)
    print("KERNEL_OK")
</pallas_src>

<mosaic_0001>
module attributes {stable_mosaic.version = 11 : i64} {
  func.func @_actor_kernel(%arg0: i32, %arg1: memref<2xf32, #tpu.memory_space<smem>>, %arg2: memref<8x128xf32, #tpu.memory_space<vmem>>, %arg3: memref<32x8xf32, #tpu.memory_space<vmem>>, %arg4: memref<32x1xf32, #tpu.memory_space<vmem>>, %arg5: memref<32x32xf32, #tpu.memory_space<vmem>>, %arg6: memref<32x1xf32, #tpu.memory_space<vmem>>, %arg7: memref<16x32xf32, #tpu.memory_space<vmem>>, %arg8: memref<16x1xf32, #tpu.memory_space<vmem>>, %arg9: memref<1x16xf32, #tpu.memory_space<vmem>>, %arg10: memref<1x1xf32, #tpu.memory_space<vmem>>, %arg11: memref<1x128xf32, #tpu.memory_space<vmem>>) attributes {dimension_semantics = [#tpu.dimension_semantics<parallel>], iteration_bounds = array<i64: 1>, scalar_prefetch = 0 : i64, scratch_operands = 0 : i64, tpu.core_type = #tpu.core_type<tc>, window_params = [{transform_indices = @transform_0, window_bounds = array<i64: 2>}, {transform_indices = @transform_1, window_bounds = array<i64: 8, 128>}, {pipeline_mode = #tpu.pipeline_mode<synchronous>, transform_indices = @transform_2, window_bounds = array<i64: 32, 8>}, {pipeline_mode = #tpu.pipeline_mode<synchronous>, transform_indices = @transform_3, window_bounds = array<i64: 32, 1>}, {pipeline_mode = #tpu.pipeline_mode<synchronous>, transform_indices = @transform_4, window_bounds = array<i64: 32, 32>}, {pipeline_mode = #tpu.pipeline_mode<synchronous>, transform_indices = @transform_5, window_bounds = array<i64: 32, 1>}, {pipeline_mode = #tpu.pipeline_mode<synchronous>, transform_indices = @transform_6, window_bounds = array<i64: 16, 32>}, {pipeline_mode = #tpu.pipeline_mode<synchronous>, transform_indices = @transform_7, window_bounds = array<i64: 16, 1>}, {pipeline_mode = #tpu.pipeline_mode<synchronous>, transform_indices = @transform_8, window_bounds = array<i64: 1, 16>}, {pipeline_mode = #tpu.pipeline_mode<synchronous>, transform_indices = @transform_9, window_bounds = array<i64: 1, 1>}, {transform_indices = @transform_10, window_bounds = array<i64: 1, 128>}]} {
    %c0 = arith.constant 0 : index
    %0 = memref.load %arg1[%c0] : memref<2xf32, #tpu.memory_space<smem>>
    %c1 = arith.constant 1 : index
    %1 = memref.load %arg1[%c1] : memref<2xf32, #tpu.memory_space<smem>>
    %c0_0 = arith.constant 0 : index
    %c0_1 = arith.constant 0 : index
    %2 = vector.load %arg2[%c0_0, %c0_1] : memref<8x128xf32, #tpu.memory_space<vmem>>, vector<8x128xf32>
    %c0_2 = arith.constant 0 : index
    %c0_3 = arith.constant 0 : index
    %3 = vector.load %arg3[%c0_2, %c0_3] : memref<32x8xf32, #tpu.memory_space<vmem>>, vector<32x8xf32>
    %c0_4 = arith.constant 0 : index
    %c0_5 = arith.constant 0 : index
    %4 = vector.load %arg4[%c0_4, %c0_5] : memref<32x1xf32, #tpu.memory_space<vmem>>, vector<32x1xf32>
    %cst = arith.constant dense<0.000000e+00> : vector<32x128xf32>
    %5 = tpu.matmul %3, %2, %cst {dimension_numbers = #tpu.dot_dimension_numbers<[1], [0], [0], [1], [0, 0, 1, 1], [], []>} : vector<32x8xf32>, vector<8x128xf32>, vector<32x128xf32> -> vector<32x128xf32>
    %6 = vector.broadcast %4 : vector<32x1xf32> to vector<32x128xf32>
    %7 = arith.addf %5, %6 : vector<32x128xf32>
    %8 = math.tanh %7 : vector<32x128xf32>
    %c0_6 = arith.constant 0 : index
    %c0_7 = arith.constant 0 : index
    %9 = vector.load %arg5[%c0_6, %c0_7] : memref<32x32xf32, #tpu.memory_space<vmem>>, vector<32x32xf32>
    %c0_8 = arith.constant 0 : index
    %c0_9 = arith.constant 0 : index
    %10 = vector.load %arg6[%c0_8, %c0_9] : memref<32x1xf32, #tpu.memory_space<vmem>>, vector<32x1xf32>
    %cst_10 = arith.constant dense<0.000000e+00> : vector<32x128xf32>
    %11 = tpu.matmul %9, %8, %cst_10 {dimension_numbers = #tpu.dot_dimension_numbers<[1], [0], [0], [1], [0, 0, 1, 1], [], []>} : vector<32x32xf32>, vector<32x128xf32>, vector<32x128xf32> -> vector<32x128xf32>
    %12 = vector.broadcast %10 : vector<32x1xf32> to vector<32x128xf32>
    %13 = arith.addf %11, %12 : vector<32x128xf32>
    %14 = math.tanh %13 : vector<32x128xf32>
    %c0_11 = arith.constant 0 : index
    %c0_12 = arith.constant 0 : index
    %15 = vector.load %arg7[%c0_11, %c0_12] : memref<16x32xf32, #tpu.memory_space<vmem>>, vector<16x32xf32>
    %c0_13 = arith.constant 0 : index
    %c0_14 = arith.constant 0 : index
    %16 = vector.load %arg8[%c0_13, %c0_14] : memref<16x1xf32, #tpu.memory_space<vmem>>, vector<16x1xf32>
    %cst_15 = arith.constant dense<0.000000e+00> : vector<16x128xf32>
    %17 = tpu.matmul %15, %14, %cst_15 {dimension_numbers = #tpu.dot_dimension_numbers<[1], [0], [0], [1], [0, 0, 1, 1], [], []>} : vector<16x32xf32>, vector<32x128xf32>, vector<16x128xf32> -> vector<16x128xf32>
    %18 = vector.broadcast %16 : vector<16x1xf32> to vector<16x128xf32>
    %19 = arith.addf %17, %18 : vector<16x128xf32>
    %20 = math.tanh %19 : vector<16x128xf32>
    %c0_16 = arith.constant 0 : index
    %c0_17 = arith.constant 0 : index
    %21 = vector.load %arg9[%c0_16, %c0_17] : memref<1x16xf32, #tpu.memory_space<vmem>>, vector<1x16xf32>
    %c0_18 = arith.constant 0 : index
    %c0_19 = arith.constant 0 : index
    %22 = vector.load %arg10[%c0_18, %c0_19] : memref<1x1xf32, #tpu.memory_space<vmem>>, vector<1x1xf32>
    %cst_20 = arith.constant dense<0.000000e+00> : vector<1x128xf32>
    %23 = tpu.matmul %21, %20, %cst_20 {dimension_numbers = #tpu.dot_dimension_numbers<[1], [0], [0], [1], [0, 0, 1, 1], [], []>} : vector<1x16xf32>, vector<16x128xf32>, vector<1x128xf32> -> vector<1x128xf32>
    %24 = vector.broadcast %22 : vector<1x1xf32> to vector<1x128xf32>
    %25 = arith.addf %23, %24 : vector<1x128xf32>
    %26 = vector.broadcast %0 : f32 to vector<1x128xf32>
    %27 = arith.maximumf %26, %25 : vector<1x128xf32>
    %28 = vector.broadcast %1 : f32 to vector<1x128xf32>
    %29 = arith.minimumf %28, %27 : vector<1x128xf32>
    %c0_21 = arith.constant 0 : index
    %c0_22 = arith.constant 0 : index
    %30 = vector.load %arg11[%c0_21, %c0_22] : memref<1x128xf32, #tpu.memory_space<vmem>>, vector<1x128xf32>
    tpu.vector_store %arg11[%c0_21, %c0_22], %29 {strides = array<i32>} : memref<1x128xf32, #tpu.memory_space<vmem>>, vector<1x128xf32>,
    return
  }
  func.func @transform_0(%arg0: i32) -> i32 {
    %c0_i32 = arith.constant 0 : i32
    %c0_i32_0 = arith.constant 0 : i32
    return %c0_i32 : i32
  }
  func.func @transform_1(%arg0: i32) -> (i32, i32) {
    %c0_i32 = arith.constant 0 : i32
    %c0_i32_0 = arith.constant 0 : i32
    return %c0_i32, %arg0 : i32, i32
  }
  func.func @transform_2(%arg0: i32) -> (i32, i32) {
    %c0_i32 = arith.constant 0 : i32
    %c0_i32_0 = arith.constant 0 : i32
    %c0_i32_1 = arith.constant 0 : i32
    return %c0_i32, %c0_i32_0 : i32, i32
  }
  func.func @transform_3(%arg0: i32) -> (i32, i32) {
    %c0_i32 = arith.constant 0 : i32
    %c0_i32_0 = arith.constant 0 : i32
    %c0_i32_1 = arith.constant 0 : i32
    return %c0_i32, %c0_i32_0 : i32, i32
  }
  func.func @transform_4(%arg0: i32) -> (i32, i32) {
    %c0_i32 = arith.constant 0 : i32
    %c0_i32_0 = arith.constant 0 : i32
    %c0_i32_1 = arith.constant 0 : i32
    return %c0_i32, %c0_i32_0 : i32, i32
  }
  func.func @transform_5(%arg0: i32) -> (i32, i32) {
    %c0_i32 = arith.constant 0 : i32
    %c0_i32_0 = arith.constant 0 : i32
    %c0_i32_1 = arith.constant 0 : i32
    return %c0_i32, %c0_i32_0 : i32, i32
  }
  func.func @transform_6(%arg0: i32) -> (i32, i32) {
    %c0_i32 = arith.constant 0 : i32
    %c0_i32_0 = arith.constant 0 : i32
    %c0_i32_1 = arith.constant 0 : i32
    return %c0_i32, %c0_i32_0 : i32, i32
  }
  func.func @transform_7(%arg0: i32) -> (i32, i32) {
    %c0_i32 = arith.constant 0 : i32
    %c0_i32_0 = arith.constant 0 : i32
    %c0_i32_1 = arith.constant 0 : i32
    return %c0_i32, %c0_i32_0 : i32, i32
  }
  func.func @transform_8(%arg0: i32) -> (i32, i32) {
    %c0_i32 = arith.constant 0 : i32
    %c0_i32_0 = arith.constant 0 : i32
    %c0_i32_1 = arith.constant 0 : i32
    return %c0_i32, %c0_i32_0 : i32, i32
  }
  func.func @transform_9(%arg0: i32) -> (i32, i32) {
    %c0_i32 = arith.constant 0 : i32
    %c0_i32_0 = arith.constant 0 : i32
    %c0_i32_1 = arith.constant 0 : i32
    return %c0_i32, %c0_i32_0 : i32, i32
  }
  func.func @transform_10(%arg0: i32) -> (i32, i32) {
    %c0_i32 = arith.constant 0 : i32
    %c0_i32_0 = arith.constant 0 : i32
    return %c0_i32, %arg0 : i32, i32
  }
}

</mosaic_0001>

<llo_original>
// kernel: tpu_custom_call.1
$region0: #{tpu_custom_call.1}
  #allocation0 [shape = 'u32[]', space=smem, size = 0x4, offset = 0x4, fixed_abs, tag = 'smem constant byte address 0x4 - core index']
  #allocation1 [shape = 'u32[144,128]{1,0:T(1,128)}', space=vmem, size = 0x12000, scoped, tag = 'internal scratch']
  #allocation2 [shape = 'f32[1,1]{1,0:T(1,128)S(1)}', space=vmem, size = 0x200, scoped, tag = 'scoped memory for tpu_custom_call.1']
  %s0 = inlined_call_operand.vmem [shape: f32[2], index: 0, kind: input, shape index: {}]
  %s1 = inlined_call_operand.vmem [shape: f32[8,128], index: 1, kind: input, shape index: {}]
  %s2 = inlined_call_operand.vmem [shape: f32[32,8], index: 2, kind: input, shape index: {}]
  %s3 = inlined_call_operand.vmem [shape: f32[32,1], index: 3, kind: input, shape index: {}]
  %s4 = inlined_call_operand.vmem [shape: f32[32,32], index: 4, kind: input, shape index: {}]
  %s5 = inlined_call_operand.vmem [shape: f32[32,1], index: 5, kind: input, shape index: {}]
  %s6 = inlined_call_operand.vmem [shape: f32[16,32], index: 6, kind: input, shape index: {}]
  %s7 = inlined_call_operand.vmem [shape: f32[16,1], index: 7, kind: input, shape index: {}]
  %s8 = inlined_call_operand.vmem [shape: f32[1,16], index: 8, kind: input, shape index: {}]
  %s9 = inlined_call_operand.<no memory space> [shape: f32[1,1], index: 9, kind: input, shape index: {}]
  %s10 = inlined_call_operand.hbm [shape: f32[1,128], index: 10, kind: output, shape index: {}]
  %s11 = sld [smem:[#allocation0]]
  $region54: #{tpu_custom_call.1} parent=0
    _
  %s13 = ssub.s32 1, %s11
  %s14 = scalar_select 0, %s13, %s11
  %v15 = vstv %s9
  %16 = vst [vmem:[#allocation2] sm:$0x1] %v15
  $region1: #{tpu_custom_call.1} parent=0
    #allocation3 [shape = 'u8[512]{0}', space=smem, size = 0x200, scoped, tag = 'input window, operand 0, single buffered']
    #allocation4 [shape = 's32[1]{0}', space=sflag, size = 0x4, scoped, tag = 'scoped memory for tpu_custom_call.1']
    #allocation5 [shape = 's32[1]{0}', space=sflag, size = 0x4, scoped, tag = 'scoped memory for tpu_custom_call.1']
    #allocation6 [shape = 'u8[512]{0}', space=vmem, size = 0x400, scoped, tag = 'output window, operand 0, single buffered']
    %17 = vsyncpa [#allocation5], 0
    %18 = vsyncpa [#allocation4], 0
    // Predicated region
    $region2: #{tpu_custom_call.1} parent=1 // pred_check
      _
    $region3: #{tpu_custom_call.1} parent=1 // pred_check_branch
      %20 = sbr.rel (0) target = $region5
    $region4: #{tpu_custom_call.1} parent=1 // pred_region
      %s22 = ssub.s32 16, 16
      %23 = vsyncadd [#allocation5], %s22
      %s25 = sshll.u32 %s0, 4
      %s26 = int_to_ptr.vmem [resolvable:$true] %s25
      %28 = dma.vmem_to_smem %s26, 16, [#allocation3], [#allocation5]
    $region5: #{tpu_custom_call.1} parent=1 // pred_fallthru
      _
    // Predicated region
    $region6: #{tpu_custom_call.1} parent=1 // pred_check
      _
    $region7: #{tpu_custom_call.1} parent=1 // pred_check_branch
      %30 = sbr.rel (0) target = $region9
    $region8: #{tpu_custom_call.1} parent=1 // pred_region
      _
    $region9: #{tpu_custom_call.1} parent=1 // pred_fallthru
      _
    // Predicated region
    $region10: #{tpu_custom_call.1} parent=1 // pred_check
      _
    $region11: #{tpu_custom_call.1} parent=1 // pred_check_branch
      %32 = sbr.rel (0) target = $region13
    $region12: #{tpu_custom_call.1} parent=1 // pred_region
      _
    $region13: #{tpu_custom_call.1} parent=1 // pred_fallthru
      _
    // Predicated region
    $region14: #{tpu_custom_call.1} parent=1 // pred_check
      _
    $region15: #{tpu_custom_call.1} parent=1 // pred_check_branch
      %34 = sbr.rel (0) target = $region17
    $region16: #{tpu_custom_call.1} parent=1 // pred_region
      _
    $region17: #{tpu_custom_call.1} parent=1 // pred_fallthru
      _
    // Predicated region
    $region18: #{tpu_custom_call.1} parent=1 // pred_check
      _
    $region19: #{tpu_custom_call.1} parent=1 // pred_check_branch
      %36 = sbr.rel (0) target = $region21
    $region20: #{tpu_custom_call.1} parent=1 // pred_region
      _
    $region21: #{tpu_custom_call.1} parent=1 // pred_fallthru
      _
    // Predicated region
    $region22: #{tpu_custom_call.1} parent=1 // pred_check
      _
    $region23: #{tpu_custom_call.1} parent=1 // pred_check_branch
      %38 = sbr.rel (0) target = $region25
    $region24: #{tpu_custom_call.1} parent=1 // pred_region
      _
    $region25: #{tpu_custom_call.1} parent=1 // pred_fallthru
      _
    // Predicated region
    $region26: #{tpu_custom_call.1} parent=1 // pred_check
      _
    $region27: #{tpu_custom_call.1} parent=1 // pred_check_branch
      %40 = sbr.rel (0) target = $region29
    $region28: #{tpu_custom_call.1} parent=1 // pred_region
      _
    $region29: #{tpu_custom_call.1} parent=1 // pred_fallthru
      _
    // Predicated region
    $region30: #{tpu_custom_call.1} parent=1 // pred_check
      _
    $region31: #{tpu_custom_call.1} parent=1 // pred_check_branch
      %42 = sbr.rel (0) target = $region33
    $region32: #{tpu_custom_call.1} parent=1 // pred_region
      _
    $region33: #{tpu_custom_call.1} parent=1 // pred_fallthru
      _
    // Predicated region
    $region34: #{tpu_custom_call.1} parent=1 // pred_check
      _
    $region35: #{tpu_custom_call.1} parent=1 // pred_check_branch
      %44 = sbr.rel (0) target = $region37
    $region36: #{tpu_custom_call.1} parent=1 // pred_region
      _
    $region37: #{tpu_custom_call.1} parent=1 // pred_fallthru
      _
    // Predicated region
    $region38: #{tpu_custom_call.1} parent=1 // pred_check
      _
    $region39: #{tpu_custom_call.1} parent=1 // pred_check_branch
      %46 = sbr.rel (0) target = $region41
    $region40: #{tpu_custom_call.1} parent=1 // pred_region
      _
    $region41: #{tpu_custom_call.1} parent=1 // pred_fallthru
      _
    // Predicated region
    $region42: #{tpu_custom_call.1} parent=1 // pred_check
      _
    $region43: #{tpu_custom_call.1} parent=1 // pred_check_branch
      %48 = sbr.rel (0) target = $region45
    $region44: #{tpu_custom_call.1} parent=1 // pred_region
      %49 = dma.done [#allocation5], 16
    $region45: #{tpu_custom_call.1} parent=1 // pred_fallthru
      _
    %50 = sfence
    %s51 = sld [smem:[#allocation3]]
    %s52 = sld [smem:[#allocation3 + $0x1]]
    %v53 = vld [vmem:[%s1] sm:$0xff]
    %v54 = vld [vmem:[%s2] sm:$0xff]
    %v55 = vld [vmem:[%s2 + $0x8] sm:$0xff]
    %v56 = vld [vmem:[%s2 + $0x10] sm:$0xff]
    %v57 = vld [vmem:[%s2 + $0x18] sm:$0xff]
    %v58 = vld [vmem:[%s3] sm:$0xff]
    %v59 = vld [vmem:[%s3 + $0x8] sm:$0xff]
    %v60 = vld [vmem:[%s3 + $0x10] sm:$0xff]
    %v61 = vld [vmem:[%s3 + $0x18] sm:$0xff]
    %63 = vset.pattern.permute.xlu0 0
    %64 = vperm.xlu0 %63, %v58
    %v65 = vpop.permute.xlu0 %64
    %68 = vset.pattern.permute.xlu0 0
    %69 = vperm.xlu0 %68, %v59
    %v70 = vpop.permute.xlu0 %69
    %73 = vset.pattern.permute.xlu0 0
    %74 = vperm.xlu0 %73, %v60
    %v75 = vpop.permute.xlu0 %74
    %78 = vset.pattern.permute.xlu0 0
    %79 = vperm.xlu0 %78, %v61
    %v80 = vpop.permute.xlu0 %79
    %vm82 = vcmask 64512
    %v84 = vsel %vm82, %v54, 0
    %v87 = vsel %vm82, %v55, 0
    %v90 = vsel %vm82, %v56, 0
    %v93 = vsel %vm82, %v57, 0
    %95 = vmatprep.subr.mxu0 0.0
    %96 = vmatpush1.msra.mxu0 %v53
    %97 = vmatprep.subr.mxu0 0.0
    %98 = vmatpush1.msra.mxu0 0.0
    %99 = vmatprep.subr.mxu0 0.0
    %100 = vmatpush1.msra.mxu0 0.0
    %101 = vmatprep.subr.mxu0 0.0
    %102 = vmatpush1.msra.mxu0 0.0
    %103 = vmatprep.subr.mxu0 0.0
    %104 = vmatpush1.msra.mxu0 0.0
    %105 = vmatprep.subr.mxu0 0.0
    %106 = vmatpush1.msra.mxu0 0.0
    %107 = vmatprep.subr.mxu0 0.0
    %108 = vmatpush1.msra.mxu0 0.0
    %109 = vmatprep.subr.mxu0 0.0
    %110 = vmatpush1.msra.mxu0 0.0
    %111 = vmatprep.subr.mxu0 0.0
    %112 = vmatpush1.msra.mxu0 0.0
    %113 = vmatprep.subr.mxu0 0.0
    %114 = vmatpush1.msra.mxu0 0.0
    %115 = vmatprep.subr.mxu0 0.0
    %116 = vmatpush1.msra.mxu0 0.0
    %117 = vmatprep.subr.mxu0 0.0
    %118 = vmatpush1.msra.mxu0 0.0
    %119 = vmatprep.subr.mxu0 0.0
    %120 = vmatpush1.msra.mxu0 0.0
    %121 = vmatprep.subr.mxu0 0.0
    %122 = vmatpush1.msra.mxu0 0.0
    %123 = vmatprep.subr.mxu0 0.0
    %124 = vmatpush1.msra.mxu0 0.0
    %125 = vmatprep.subr.mxu0 0.0
    %126 = vmatpush1.msra.mxu0 0.0
    %127 = vmatprep.subr.mxu0 0.0
    %128 = vmatpush1.msra.mxu0 0.0
    %129 = vmatprep.subr.mxu0 0.0
    %130 = vmatpush1.msra.mxu0 0.0
    %131 = vmatprep.subr.mxu0 0.0
    %132 = vmatpush1.msra.mxu0 0.0
    %133 = vmatprep.subr.mxu0 0.0
    %134 = vmatpush1.msra.mxu0 0.0
    %135 = vmatprep.subr.mxu0 0.0
    %136 = vmatpush1.msra.mxu0 0.0
    %137 = vmatprep.subr.mxu0 0.0
    %138 = vmatpush1.msra.mxu0 0.0
    %139 = vmatprep.subr.mxu0 0.0
    %140 = vmatpush1.msra.mxu0 0.0
    %141 = vmatprep.subr.mxu0 0.0
    %142 = vmatpush1.msra.mxu0 0.0
    %143 = vmatprep.subr.mxu0 0.0
    %144 = vmatpush1.msra.mxu0 0.0
    %145 = vmatprep.subr.mxu0 0.0
    %146 = vmatpush1.msra.mxu0 0.0
    %147 = vmatprep.subr.mxu0 0.0
    %148 = vmatpush1.msra.mxu0 0.0
    %149 = vmatprep.subr.mxu0 0.0
    %150 = vmatpush1.msra.mxu0 0.0
    %151 = vmatprep.subr.mxu0 0.0
    %152 = vmatpush1.msra.mxu0 0.0
    %153 = vmatprep.subr.mxu0 0.0
    %154 = vmatpush1.msra.mxu0 0.0
    %155 = vmatprep.subr.mxu0 0.0
    %156 = vmatpush1.msra.mxu0 0.0
    %157 = vmatprep.subr.mxu0 0.0
    %158 = vmatpush1.msra.mxu0 0.0
    %159 = vmatprep.mubr.f32.mxu0 0.0
    %160 = vmatmul.mubr.f32.gmra.mrb[0].mxu0 %v84
    %v161 = vpop.f32.mrb[0].mxu0
    %v162 = vadd.f32 %v65, %v161
    %v163 = vpop.f32.mrb[0].mxu0
    %164 = vmatprep.mubr.f32.mxu0 0.0
    %165 = vmatmul.mubr.f32.gmra.mrb[0].mxu0 %v87
    %v166 = vpop.f32.mrb[0].mxu0
    %v167 = vadd.f32 %v70, %v166
    %v168 = vpop.f32.mrb[0].mxu0
    %169 = vmatprep.mubr.f32.mxu0 0.0
    %170 = vmatmul.mubr.f32.gmra.mrb[0].mxu0 %v90
    %v171 = vpop.f32.mrb[0].mxu0
    %v172 = vadd.f32 %v75, %v171
    %v173 = vpop.f32.mrb[0].mxu0
    %174 = vmatprep.mubr.f32.mxu0 0.0
    %175 = vmatmul.mubr.f32.gmra.mrb[0].mxu0 %v93
    %v176 = vpop.f32.mrb[0].mxu0
    %v177 = vadd.f32 %v80, %v176
    %v178 = vpop.f32.mrb[0].mxu0
    %179 = vdwg.mxu0
    %v180 = vtanh.pop %v162
    %v181 = vtanh.pop %v167
    %v182 = vtanh.pop %v172
    %v183 = vtanh.pop %v177
    %v184 = vld [vmem:[%s4] sm:$0xff]
    %v185 = vld [vmem:[%s4 + $0x8] sm:$0xff]
    %v186 = vld [vmem:[%s4 + $0x10] sm:$0xff]
    %v187 = vld [vmem:[%s4 + $0x18] sm:$0xff]
    %v188 = vld [vmem:[%s5] sm:$0xff]
    %v189 = vld [vmem:[%s5 + $0x8] sm:$0xff]
    %v190 = vld [vmem:[%s5 + $0x10] sm:$0xff]
    %v191 = vld [vmem:[%s5 + $0x18] sm:$0xff]
    %193 = vset.pattern.permute.xlu0 0
    %194 = vperm.xlu0 %193, %v188
    %v195 = vpop.permute.xlu0 %194
    %198 = vset.pattern.permute.xlu0 0
    %199 = vperm.xlu0 %198, %v189
    %v200 = vpop.permute.xlu0 %199
    %203 = vset.pattern.permute.xlu0 0
    %204 = vperm.xlu0 %203, %v190
    %v205 = vpop.permute.xlu0 %204
    %208 = vset.pattern.permute.xlu0 0
    %209 = vperm.xlu0 %208, %v191
    %v210 = vpop.permute.xlu0 %209
    %vm212 = vcmask 261120
    %v214 = vsel %vm212, %v184, 0
    %v217 = vsel %vm212, %v185, 0
    %v220 = vsel %vm212, %v186, 0
    %v223 = vsel %vm212, %v187, 0
    %225 = vmatprep.subr.mxu0 0.0
    %226 = vmatpush1.msra.mxu0 %v180
    %227 = vmatprep.subr.mxu0 0.0
    %228 = vmatpush1.msra.mxu0 %v181
    %229 = vmatprep.subr.mxu0 0.0
    %230 = vmatpush1.msra.mxu0 %v182
    %231 = vmatprep.subr.mxu0 0.0
    %232 = vmatpush1.msra.mxu0 %v183
    %233 = vmatprep.subr.mxu0 0.0
    %234 = vmatpush1.msra.mxu0 0.0
    %235 = vmatprep.subr.mxu0 0.0
    %236 = vmatpush1.msra.mxu0 0.0
    %237 = vmatprep.subr.mxu0 0.0
    %238 = vmatpush1.msra.mxu0 0.0
    %239 = vmatprep.subr.mxu0 0.0
    %240 = vmatpush1.msra.mxu0 0.0
    %241 = vmatprep.subr.mxu0 0.0
    %242 = vmatpush1.msra.mxu0 0.0
    %243 = vmatprep.subr.mxu0 0.0
    %244 = vmatpush1.msra.mxu0 0.0
    %245 = vmatprep.subr.mxu0 0.0
    %246 = vmatpush1.msra.mxu0 0.0
    %247 = vmatprep.subr.mxu0 0.0
    %248 = vmatpush1.msra.mxu0 0.0
    %249 = vmatprep.subr.mxu0 0.0
    %250 = vmatpush1.msra.mxu0 0.0
    %251 = vmatprep.subr.mxu0 0.0
    %252 = vmatpush1.msra.mxu0 0.0
    %253 = vmatprep.subr.mxu0 0.0
    %254 = vmatpush1.msra.mxu0 0.0
    %255 = vmatprep.subr.mxu0 0.0
    %256 = vmatpush1.msra.mxu0 0.0
    %257 = vmatprep.subr.mxu0 0.0
    %258 = vmatpush1.msra.mxu0 0.0
    %259 = vmatprep.subr.mxu0 0.0
    %260 = vmatpush1.msra.mxu0 0.0
    %261 = vmatprep.subr.mxu0 0.0
    %262 = vmatpush1.msra.mxu0 0.0
    %263 = vmatprep.subr.mxu0 0.0
    %264 = vmatpush1.msra.mxu0 0.0
    %265 = vmatprep.subr.mxu0 0.0
    %266 = vmatpush1.msra.mxu0 0.0
    %267 = vmatprep.subr.mxu0 0.0
    %268 = vmatpush1.msra.mxu0 0.0
    %269 = vmatprep.subr.mxu0 0.0
    %270 = vmatpush1.msra.mxu0 0.0
    %271 = vmatprep.subr.mxu0 0.0
    %272 = vmatpush1.msra.mxu0 0.0
    %273 = vmatprep.subr.mxu0 0.0
    %274 = vmatpush1.msra.mxu0 0.0
    %275 = vmatprep.subr.mxu0 0.0
    %276 = vmatpush1.msra.mxu0 0.0
    %277 = vmatprep.subr.mxu0 0.0
    %278 = vmatpush1.msra.mxu0 0.0
    %279 = vmatprep.subr.mxu0 0.0
    %280 = vmatpush1.msra.mxu0 0.0
    %281 = vmatprep.subr.mxu0 0.0
    %282 = vmatpush1.msra.mxu0 0.0
    %283 = vmatprep.subr.mxu0 0.0
    %284 = vmatpush1.msra.mxu0 0.0
    %285 = vmatprep.subr.mxu0 0.0
    %286 = vmatpush1.msra.mxu0 0.0
    %287 = vmatprep.subr.mxu0 0.0
    %288 = vmatpush1.msra.mxu0 0.0
    %289 = vmatprep.mubr.f32.mxu0 0.0
    %290 = vmatmul.mubr.f32.gmra.mrb[0].mxu0 %v214
    %v291 = vpop.f32.mrb[0].mxu0
    %v292 = vadd.f32 %v195, %v291
    %v293 = vpop.f32.mrb[0].mxu0
    %294 = vmatprep.mubr.f32.mxu0 0.0
    %295 = vmatmul.mubr.f32.gmra.mrb[0].mxu0 %v217
    %v296 = vpop.f32.mrb[0].mxu0
    %v297 = vadd.f32 %v200, %v296
    %v298 = vpop.f32.mrb[0].mxu0
    %299 = vmatprep.mubr.f32.mxu0 0.0
    %300 = vmatmul.mubr.f32.gmra.mrb[0].mxu0 %v220
    %v301 = vpop.f32.mrb[0].mxu0
    %v302 = vadd.f32 %v205, %v301
    %v303 = vpop.f32.mrb[0].mxu0
    %304 = vmatprep.mubr.f32.mxu0 0.0
    %305 = vmatmul.mubr.f32.gmra.mrb[0].mxu0 %v223
    %v306 = vpop.f32.mrb[0].mxu0
    %v307 = vadd.f32 %v210, %v306
    %v308 = vpop.f32.mrb[0].mxu0
    %309 = vdwg.mxu0
    %v310 = vtanh.pop %v292
    %v311 = vtanh.pop %v297
    %v312 = vtanh.pop %v302
    %v313 = vtanh.pop %v307
    %v314 = vld [vmem:[%s6] sm:$0xff]
    %v315 = vld [vmem:[%s6 + $0x8] sm:$0xff]
    %v316 = vld [vmem:[%s7] sm:$0xff]
    %v317 = vld [vmem:[%s7 + $0x8] sm:$0xff]
    %319 = vset.pattern.permute.xlu0 0
    %320 = vperm.xlu0 %319, %v316
    %v321 = vpop.permute.xlu0 %320
    %324 = vset.pattern.permute.xlu0 0
    %325 = vperm.xlu0 %324, %v317
    %v326 = vpop.permute.xlu0 %325
    %v329 = vsel %vm212, %v314, 0
    %v332 = vsel %vm212, %v315, 0
    %334 = vmatprep.subr.mxu0 0.0
    %335 = vmatpush1.msra.mxu0 %v310
    %336 = vmatprep.subr.mxu0 0.0
    %337 = vmatpush1.msra.mxu0 %v311
    %338 = vmatprep.subr.mxu0 0.0
    %339 = vmatpush1.msra.mxu0 %v312
    %340 = vmatprep.subr.mxu0 0.0
    %341 = vmatpush1.msra.mxu0 %v313
    %342 = vmatprep.subr.mxu0 0.0
    %343 = vmatpush1.msra.mxu0 0.0
    %344 = vmatprep.subr.mxu0 0.0
    %345 = vmatpush1.msra.mxu0 0.0
    %346 = vmatprep.subr.mxu0 0.0
    %347 = vmatpush1.msra.mxu0 0.0
    %348 = vmatprep.subr.mxu0 0.0
    %349 = vmatpush1.msra.mxu0 0.0
    %350 = vmatprep.subr.mxu0 0.0
    %351 = vmatpush1.msra.mxu0 0.0
    %352 = vmatprep.subr.mxu0 0.0
    %353 = vmatpush1.msra.mxu0 0.0
    %354 = vmatprep.subr.mxu0 0.0
    %355 = vmatpush1.msra.mxu0 0.0
    %356 = vmatprep.subr.mxu0 0.0
    %357 = vmatpush1.msra.mxu0 0.0
    %358 = vmatprep.subr.mxu0 0.0
    %359 = vmatpush1.msra.mxu0 0.0
    %360 = vmatprep.subr.mxu0 0.0
    %361 = vmatpush1.msra.mxu0 0.0
    %362 = vmatprep.subr.mxu0 0.0
    %363 = vmatpush1.msra.mxu0 0.0
    %364 = vmatprep.subr.mxu0 0.0
    %365 = vmatpush1.msra.mxu0 0.0
    %366 = vmatprep.subr.mxu0 0.0
    %367 = vmatpush1.msra.mxu0 0.0
    %368 = vmatprep.subr.mxu0 0.0
    %369 = vmatpush1.msra.mxu0 0.0
    %370 = vmatprep.subr.mxu0 0.0
    %371 = vmatpush1.msra.mxu0 0.0
    %372 = vmatprep.subr.mxu0 0.0
    %373 = vmatpush1.msra.mxu0 0.0
    %374 = vmatprep.subr.mxu0 0.0
    %375 = vmatpush1.msra.mxu0 0.0
    %376 = vmatprep.subr.mxu0 0.0
    %377 = vmatpush1.msra.mxu0 0.0
    %378 = vmatprep.subr.mxu0 0.0
    %379 = vmatpush1.msra.mxu0 0.0
    %380 = vmatprep.subr.mxu0 0.0
    %381 = vmatpush1.msra.mxu0 0.0
    %382 = vmatprep.subr.mxu0 0.0
    %383 = vmatpush1.msra.mxu0 0.0
    %384 = vmatprep.subr.mxu0 0.0
    %385 = vmatpush1.msra.mxu0 0.0
    %386 = vmatprep.subr.mxu0 0.0
    %387 = vmatpush1.msra.mxu0 0.0
    %388 = vmatprep.subr.mxu0 0.0
    %389 = vmatpush1.msra.mxu0 0.0
    %390 = vmatprep.subr.mxu0 0.0
    %391 = vmatpush1.msra.mxu0 0.0
    %392 = vmatprep.subr.mxu0 0.0
    %393 = vmatpush1.msra.mxu0 0.0
    %394 = vmatprep.subr.mxu0 0.0
    %395 = vmatpush1.msra.mxu0 0.0
    %396 = vmatprep.subr.mxu0 0.0
    %397 = vmatpush1.msra.mxu0 0.0
    %398 = vmatprep.mubr.f32.mxu0 0.0
    %399 = vmatmul.mubr.f32.gmra.mrb[0].mxu0 %v329
    %v400 = vpop.f32.mrb[0].mxu0
    %v401 = vadd.f32 %v321, %v400
    %v402 = vpop.f32.mrb[0].mxu0
    %403 = vmatprep.mubr.f32.mxu0 0.0
    %404 = vmatmul.mubr.f32.gmra.mrb[0].mxu0 %v332
    %v405 = vpop.f32.mrb[0].mxu0
    %v406 = vadd.f32 %v326, %v405
    %v407 = vpop.f32.mrb[0].mxu0
    %408 = vdwg.mxu0
    %v409 = vtanh.pop %v401
    %v410 = vtanh.pop %v406
    %v411 = vld [vmem:[%s8] sm:$0x1]
    %v412 = vld [vmem:[#allocation2] sm:$0x1]
    %414 = vset.pattern.permute.xlu0 0
    %415 = vperm.xlu0 %414, %v412
    %v416 = vpop.permute.xlu0 %415
    %v418 = vlaneseq
    %v419 = vshrl.u32 %v418, 7
    %v420 = vsub.s32 0, %v419
    %v421 = vrot.slane %v416, %v420
    %vm422 = vcmask 130048
    %v424 = vsel %vm422, %v411, 0
    %426 = vmatprep.subr.mxu0 0.0
    %427 = vmatpush1.msra.mxu0 %v409
    %428 = vmatprep.subr.mxu0 0.0
    %429 = vmatpush1.msra.mxu0 %v410
    %430 = vmatprep.subr.mxu0 0.0
    %431 = vmatpush1.msra.mxu0 0.0
    %432 = vmatprep.subr.mxu0 0.0
    %433 = vmatpush1.msra.mxu0 0.0
    %434 = vmatprep.subr.mxu0 0.0
    %435 = vmatpush1.msra.mxu0 0.0
    %436 = vmatprep.subr.mxu0 0.0
    %437 = vmatpush1.msra.mxu0 0.0
    %438 = vmatprep.subr.mxu0 0.0
    %439 = vmatpush1.msra.mxu0 0.0
    %440 = vmatprep.subr.mxu0 0.0
    %441 = vmatpush1.msra.mxu0 0.0
    %442 = vmatprep.subr.mxu0 0.0
    %443 = vmatpush1.msra.mxu0 0.0
    %444 = vmatprep.subr.mxu0 0.0
    %445 = vmatpush1.msra.mxu0 0.0
    %446 = vmatprep.subr.mxu0 0.0
    %447 = vmatpush1.msra.mxu0 0.0
    %448 = vmatprep.subr.mxu0 0.0
    %449 = vmatpush1.msra.mxu0 0.0
    %450 = vmatprep.subr.mxu0 0.0
    %451 = vmatpush1.msra.mxu0 0.0
    %452 = vmatprep.subr.mxu0 0.0
    %453 = vmatpush1.msra.mxu0 0.0
    %454 = vmatprep.subr.mxu0 0.0
    %455 = vmatpush1.msra.mxu0 0.0
    %456 = vmatprep.subr.mxu0 0.0
    %457 = vmatpush1.msra.mxu0 0.0
    %458 = vmatprep.subr.mxu0 0.0
    %459 = vmatpush1.msra.mxu0 0.0
    %460 = vmatprep.subr.mxu0 0.0
    %461 = vmatpush1.msra.mxu0 0.0
    %462 = vmatprep.subr.mxu0 0.0
    %463 = vmatpush1.msra.mxu0 0.0
    %464 = vmatprep.subr.mxu0 0.0
    %465 = vmatpush1.msra.mxu0 0.0
    %466 = vmatprep.subr.mxu0 0.0
    %467 = vmatpush1.msra.mxu0 0.0
    %468 = vmatprep.subr.mxu0 0.0
    %469 = vmatpush1.msra.mxu0 0.0
    %470 = vmatprep.subr.mxu0 0.0
    %471 = vmatpush1.msra.mxu0 0.0
    %472 = vmatprep.subr.mxu0 0.0
    %473 = vmatpush1.msra.mxu0 0.0
    %474 = vmatprep.subr.mxu0 0.0
    %475 = vmatpush1.msra.mxu0 0.0
    %476 = vmatprep.subr.mxu0 0.0
    %477 = vmatpush1.msra.mxu0 0.0
    %478 = vmatprep.subr.mxu0 0.0
    %479 = vmatpush1.msra.mxu0 0.0
    %480 = vmatprep.subr.mxu0 0.0
    %481 = vmatpush1.msra.mxu0 0.0
    %482 = vmatprep.subr.mxu0 0.0
    %483 = vmatpush1.msra.mxu0 0.0
    %484 = vmatprep.subr.mxu0 0.0
    %485 = vmatpush1.msra.mxu0 0.0
    %486 = vmatprep.subr.mxu0 0.0
    %487 = vmatpush1.msra.mxu0 0.0
    %488 = vmatprep.subr.mxu0 0.0
    %489 = vmatpush1.msra.mxu0 0.0
    %490 = vmatprep.mubr.f32.mxu0 0.0
    %491 = vmatmul.mubr.f32.gmra.mrb[0].mxu0 %v424
    %v492 = vpop.f32.mrb[0].mxu0
    %v493 = vadd.f32 %v421, %v492
    %v494 = vpop.f32.mrb[0].mxu0
    %495 = vdwg.mxu0
    %v496 = vstv %s51
    %v497 = vmax.f32 %v496, %v493
    %v498 = vstv %s52
    %v499 = vmin.f32 %v498, %v497
    %500 = vst [vmem:[#allocation6] sm:$0x1] %v499
    // Predicated region
    $region46: #{tpu_custom_call.1} parent=1 // pred_check
      _
    $region47: #{tpu_custom_call.1} parent=1 // pred_check_branch
      %502 = sbr.rel (0) target = $region49
    $region48: #{tpu_custom_call.1} parent=1 // pred_region
      %s504 = ssub.s32 16, 16
      %505 = vsyncadd [#allocation4], %s504
      %s507 = sshll.u32 [#allocation6], 4
      %s508 = int_to_ptr.vmem [resolvable:$true] %s507
      %510 = dma.vmem_to_hbm [thread:$0]  %s508, 16, %s10, [#allocation4]
    $region49: #{tpu_custom_call.1} parent=1 // pred_fallthru
      _
    // Predicated region
    $region50: #{tpu_custom_call.1} parent=1 // pred_check
      _
    $region51: #{tpu_custom_call.1} parent=1 // pred_check_branch
      %512 = sbr.rel (0) target = $region53
    $region52: #{tpu_custom_call.1} parent=1 // pred_region
      %513 = dma.done [#allocation4], 16
    $region53: #{tpu_custom_call.1} parent=1 // pred_fallthru
      _
    %514 = vsyncpa [#allocation4], 1
    %515 = vsyncpa [#allocation5], 1

</llo_original>
